<compile_context>
chip_gen: v7x
topology: tpu7x:2x2x1
jax: 0.10.0
libtpu: 0.0.40
codegen_flags: <defaults>
</compile_context>

<pallas_src>
import jax
import jax.numpy as jnp
from jax.experimental import pallas as pl
from jax.experimental.pallas import tpu as pltpu


def _mlp_kernel(x_ref, w1_ref, b1_ref, w2_ref, b2_ref, o_ref):
    # fc1 + ReLU (f32 accumulate on the MXU); b1 (1, hidden) broadcasts over rows.
    h = jnp.dot(x_ref[...], w1_ref[...], preferred_element_type=jnp.float32)
    h = jnp.maximum(h + b1_ref[...], 0.0)
    # fc2 + Sigmoid (EUP handles exp/recip; stays f32 — v5e has no bf16 VPU/EUP path).
    z = jnp.dot(h, w2_ref[...], preferred_element_type=jnp.float32)
    o_ref[...] = jax.nn.sigmoid(z + b2_ref[...]).astype(o_ref.dtype)


def _round_up(x, m):
    return ((x + m - 1) // m) * m


def _vmem_limit_bytes():
    """Per-generation scoped-VMEM limit: v7x has 64 MiB physical/TC, v5e/v6e have 128 MiB."""
    phys = 64 * 1024 * 1024  # conservative default (v7x-sized) if the query fails
    try:
        info = pltpu.get_tpu_info()
        phys = int(getattr(info, "vmem_capacity_bytes", phys))
    except Exception:
        pass
    if phys > 64 * 1024 * 1024:
        return 96 * 1024 * 1024      # v5e / v6e: plenty of headroom under 128 MiB
    return 48 * 1024 * 1024          # v7x (or unknown): stay under 64 MiB physical


def prepare_params(w1, b1, w2, b2):
    """Hoisted once-per-model weight prep (torch nn.Linear layouts -> kernel layouts).

    w1: (hidden, in), b1: (hidden,), w2: (out, hidden), b2: (out,)."""
    return (
        jnp.asarray(w1).T,               # (in, hidden)
        jnp.asarray(b1).reshape(1, -1),  # (1, hidden)
        jnp.asarray(w2).T,               # (hidden, out)
        jnp.asarray(b2).reshape(1, -1),  # (1, out)
    )


def simple_classifier_prepared(x, params, *, block_b=4096):
    """x: (B, in); params from prepare_params()."""
    w1_t, b1_2d, w2_t, b2_2d = params
    B, in_sz = x.shape
    hidden = w1_t.shape[1]
    out_sz = w2_t.shape[1]

    # ---- batch tile sizing: budget = half the per-generation VMEM limit, counting the
    # lane-padded (to 128) VMEM footprints of the streamed x / out double-buffers and
    # the compiler-managed intermediates h and z. ----
    vmem_limit = _vmem_limit_bytes()
    budget = vmem_limit // 2

    def lane(n):
        return _round_up(max(n, 1), 128)

    per_row_bytes = 4 * (2 * lane(in_sz)        # x, double-buffered
                         + 3 * lane(out_sz)     # out double-buffered + z
                         + 2 * lane(hidden))    # h (+ slack for elementwise temps)
    tb_cap = max(8, (budget // per_row_bytes) // 8 * 8)
    tb = min(block_b, tb_cap)

    if B <= tb:
        # Single tile covering the whole batch (block dim == full array dim -> always legal).
        tb = B
        grid_b = 1
    else:
        tb = max(8, (tb // 8) * 8)
        grid_b = pl.cdiv(B, tb)
        if grid_b > 1 and grid_b % 2 == 1:
            # Nudge toward an even number of grid steps so ("parallel",) semantics keep
            # both v7x TensorCores busy; neutral on single-TC v5e/v6e.
            tb_even = _round_up(pl.cdiv(B, grid_b + 1), 8)
            if 8 <= tb_even < tb:
                tb = tb_even
                grid_b = pl.cdiv(B, tb)

    cost = pl.CostEstimate(
        flops=2 * B * (in_sz * hidden + hidden * out_sz),
        transcendentals=B * out_sz,
        bytes_accessed=4 * (B * in_sz + in_sz * hidden + hidden
                            + hidden * out_sz + out_sz + B * out_sz),
    )

    return pl.pallas_call(
        _mlp_kernel,
        out_shape=jax.ShapeDtypeStruct((B, out_sz), x.dtype),
        grid_spec=pltpu.PrefetchScalarGridSpec(
            num_scalar_prefetch=0,
            grid=(grid_b,),
            in_specs=[
                # Streamed activations; ragged last tile is handled by Pallas (no pre-pad).
                pl.BlockSpec((tb, in_sz), lambda i: (i, 0)),
                # Tiny weights stay VMEM-resident via constant index_map.
                pl.BlockSpec((in_sz, hidden), lambda i: (0, 0)),
                pl.BlockSpec((1, hidden), lambda i: (0, 0)),
                pl.BlockSpec((hidden, out_sz), lambda i: (0, 0)),
                pl.BlockSpec((1, out_sz), lambda i: (0, 0)),
            ],
            # Full (small) feature dim in the output block: 16x fewer writeback bytes than
            # a 128-padded output; rows of the ragged last tile are masked on writeback.
            out_specs=pl.BlockSpec((tb, out_sz), lambda i: (i, 0)),
        ),
        compiler_params=pltpu.CompilerParams(
            dimension_semantics=("parallel",),   # shard batch tiles across TCs (v7x)
            vmem_limit_bytes=vmem_limit,
        ),
        cost_estimate=cost,
    )(x, w1_t, b1_2d, w2_t, b2_2d)


def simple_classifier(x, w1, b1, w2, b2, *, block_b=4096):
    """Convenience one-shot wrapper (torch nn.Linear parameter conventions)."""
    return simple_classifier_prepared(x, prepare_params(w1, b1, w2, b2), block_b=block_b)


def _reference(x, w1, b1, w2, b2):
    h = jnp.maximum(x @ w1.T + b1, 0.0)
    z = h @ w2.T + b2
    return 1.0 / (1.0 + jnp.exp(-z))


if __name__ == "__main__":
    # Small shapes consistent with the module: batch=2, input=16, hidden=32, output=8.
    B, IN, HID, OUT = 2, 16, 32, 8

    key = jax.random.PRNGKey(0)
    kx, k1, k2, k3, k4 = jax.random.split(key, 5)

    x = jax.random.normal(kx, (B, IN), dtype=jnp.float32)
    # Deterministic synthetic parameters (nn.Linear shapes: weight (out, in), bias (out,)).
    w1 = jax.random.normal(k1, (HID, IN), dtype=jnp.float32) * 0.1
    b1 = jax.random.normal(k2, (HID,), dtype=jnp.float32) * 0.1
    w2 = jax.random.normal(k3, (OUT, HID), dtype=jnp.float32) * 0.1
    b2 = jax.random.normal(k4, (OUT,), dtype=jnp.float32) * 0.1

    # Weight prep hoisted out of the per-call path.
    params = prepare_params(w1, b1, w2, b2)

    out = jax.block_until_ready(simple_classifier_prepared(x, params))
    ref = _reference(x, w1, b1, w2, b2)
    assert out.shape == (B, OUT)
    assert jnp.allclose(out, ref, atol=1e-5, rtol=1e-5)

    # Also exercise the multi-tile path (ragged last tile, even-grid nudge, no batch pad).
    B2 = 300
    x2 = jax.random.normal(kx, (B2, IN), dtype=jnp.float32)
    out2 = jax.block_until_ready(simple_classifier_prepared(x2, params, block_b=128))
    ref2 = _reference(x2, w1, b1, w2, b2)
    assert out2.shape == (B2, OUT)
    assert jnp.allclose(out2, ref2, atol=1e-5, rtol=1e-5)

    print("KERNEL_OK")
</pallas_src>

<mosaic_0001>
module attributes {stable_mosaic.version = 11 : i64} {
  func.func @_mlp_kernel(%arg0: i32, %arg1: memref<2x16xf32, #tpu.memory_space<vmem>>, %arg2: memref<16x32xf32, #tpu.memory_space<vmem>>, %arg3: memref<1x32xf32, #tpu.memory_space<vmem>>, %arg4: memref<32x8xf32, #tpu.memory_space<vmem>>, %arg5: memref<1x8xf32, #tpu.memory_space<vmem>>, %arg6: memref<2x8xf32, #tpu.memory_space<vmem>>) attributes {dimension_semantics = [#tpu.dimension_semantics<parallel>], iteration_bounds = array<i64: 1>, scalar_prefetch = 0 : i64, scratch_operands = 0 : i64, tpu.core_type = #tpu.core_type<tc>, window_params = [{transform_indices = @transform_0, window_bounds = array<i64: 2, 16>}, {pipeline_mode = #tpu.pipeline_mode<synchronous>, transform_indices = @transform_1, window_bounds = array<i64: 16, 32>}, {pipeline_mode = #tpu.pipeline_mode<synchronous>, transform_indices = @transform_2, window_bounds = array<i64: 1, 32>}, {pipeline_mode = #tpu.pipeline_mode<synchronous>, transform_indices = @transform_3, window_bounds = array<i64: 32, 8>}, {pipeline_mode = #tpu.pipeline_mode<synchronous>, transform_indices = @transform_4, window_bounds = array<i64: 1, 8>}, {transform_indices = @transform_5, window_bounds = array<i64: 2, 8>}]} {
    %c0 = arith.constant 0 : index
    %c0_0 = arith.constant 0 : index
    %0 = vector.load %arg1[%c0, %c0_0] : memref<2x16xf32, #tpu.memory_space<vmem>>, vector<2x16xf32>
    %c0_1 = arith.constant 0 : index
    %c0_2 = arith.constant 0 : index
    %1 = vector.load %arg2[%c0_1, %c0_2] : memref<16x32xf32, #tpu.memory_space<vmem>>, vector<16x32xf32>
    %cst = arith.constant dense<0.000000e+00> : vector<2x32xf32>
    %2 = tpu.matmul %0, %1, %cst {dimension_numbers = #tpu.dot_dimension_numbers<[1], [0], [0], [1], [0, 0, 1, 1], [], []>} : vector<2x16xf32>, vector<16x32xf32>, vector<2x32xf32> -> vector<2x32xf32>
    %c0_3 = arith.constant 0 : index
    %c0_4 = arith.constant 0 : index
    %3 = vector.load %arg3[%c0_3, %c0_4] : memref<1x32xf32, #tpu.memory_space<vmem>>, vector<1x32xf32>
    %4 = vector.broadcast %3 : vector<1x32xf32> to vector<2x32xf32>
    %5 = arith.addf %2, %4 : vector<2x32xf32>
    %cst_5 = arith.constant 0.000000e+00 : f32
    %6 = vector.broadcast %cst_5 : f32 to vector<2x32xf32>
    %7 = arith.maximumf %5, %6 : vector<2x32xf32>
    %c0_6 = arith.constant 0 : index
    %c0_7 = arith.constant 0 : index
    %8 = vector.load %arg4[%c0_6, %c0_7] : memref<32x8xf32, #tpu.memory_space<vmem>>, vector<32x8xf32>
    %cst_8 = arith.constant dense<0.000000e+00> : vector<2x8xf32>
    %9 = tpu.matmul %7, %8, %cst_8 {dimension_numbers = #tpu.dot_dimension_numbers<[1], [0], [0], [1], [0, 0, 1, 1], [], []>} : vector<2x32xf32>, vector<32x8xf32>, vector<2x8xf32> -> vector<2x8xf32>
    %c0_9 = arith.constant 0 : index
    %c0_10 = arith.constant 0 : index
    %10 = vector.load %arg5[%c0_9, %c0_10] : memref<1x8xf32, #tpu.memory_space<vmem>>, vector<1x8xf32>
    %11 = vector.broadcast %10 : vector<1x8xf32> to vector<2x8xf32>
    %12 = arith.addf %9, %11 : vector<2x8xf32>
    %13 = arith.negf %12 : vector<2x8xf32>
    %14 = math.exp %13 : vector<2x8xf32>
    %cst_11 = arith.constant 1.000000e+00 : f32
    %15 = vector.broadcast %cst_11 : f32 to vector<2x8xf32>
    %16 = arith.addf %15, %14 : vector<2x8xf32>
    %17 = arith.divf %15, %16 : vector<2x8xf32>
    %c0_12 = arith.constant 0 : index
    %c0_13 = arith.constant 0 : index
    %18 = vector.load %arg6[%c0_12, %c0_13] : memref<2x8xf32, #tpu.memory_space<vmem>>, vector<2x8xf32>
    tpu.vector_store %arg6[%c0_12, %c0_13], %17 {strides = array<i32>} : memref<2x8xf32, #tpu.memory_space<vmem>>, vector<2x8xf32>,
    return
  }
  func.func @transform_0(%arg0: i32) -> (i32, i32) {
    %c0_i32 = arith.constant 0 : i32
    %c0_i32_0 = arith.constant 0 : i32
    return %arg0, %c0_i32 : i32, i32
  }
  func.func @transform_1(%arg0: i32) -> (i32, i32) {
    %c0_i32 = arith.constant 0 : i32
    %c0_i32_0 = arith.constant 0 : i32
    %c0_i32_1 = arith.constant 0 : i32
    return %c0_i32, %c0_i32_0 : i32, i32
  }
  func.func @transform_2(%arg0: i32) -> (i32, i32) {
    %c0_i32 = arith.constant 0 : i32
    %c0_i32_0 = arith.constant 0 : i32
    %c0_i32_1 = arith.constant 0 : i32
    return %c0_i32, %c0_i32_0 : i32, i32
  }
  func.func @transform_3(%arg0: i32) -> (i32, i32) {
    %c0_i32 = arith.constant 0 : i32
    %c0_i32_0 = arith.constant 0 : i32
    %c0_i32_1 = arith.constant 0 : i32
    return %c0_i32, %c0_i32_0 : i32, i32
  }
  func.func @transform_4(%arg0: i32) -> (i32, i32) {
    %c0_i32 = arith.constant 0 : i32
    %c0_i32_0 = arith.constant 0 : i32
    %c0_i32_1 = arith.constant 0 : i32
    return %c0_i32, %c0_i32_0 : i32, i32
  }
  func.func @transform_5(%arg0: i32) -> (i32, i32) {
    %c0_i32 = arith.constant 0 : i32
    %c0_i32_0 = arith.constant 0 : i32
    return %arg0, %c0_i32 : i32, i32
  }
}

</mosaic_0001>

<llo_original>
// kernel: tpu_custom_call.1
$region0: #{tpu_custom_call.1}
  #allocation0 [shape = 'u32[]', space=smem, size = 0x4, offset = 0x4, fixed_abs, tag = 'smem constant byte address 0x4 - core index']
  #allocation1 [shape = 'u32[144,128]{1,0:T(1,128)}', space=vmem, size = 0x12000, scoped, tag = 'internal scratch']
  %s0 = inlined_call_operand.vmem [shape: f32[2,16], index: 0, kind: input, shape index: {}]
  %s1 = inlined_call_operand.vmem [shape: f32[16,32], index: 1, kind: input, shape index: {}]
  %s2 = inlined_call_operand.vmem [shape: f32[1,32], index: 2, kind: input, shape index: {}]
  %s3 = inlined_call_operand.vmem [shape: f32[32,8], index: 3, kind: input, shape index: {}]
  %s4 = inlined_call_operand.vmem [shape: f32[1,8], index: 4, kind: input, shape index: {}]
  %s5 = inlined_call_operand.hbm [shape: f32[2,8], index: 5, kind: output, shape index: {}]
  %s6 = sld [smem:[#allocation0]]
  $region30: #{tpu_custom_call.1} parent=0
    _
  %s8 = ssub.s32 1, %s6
  %s9 = scalar_select 0, %s8, %s6
  $region1: #{tpu_custom_call.1} parent=0
    #allocation2 [shape = 'u8[1024]{0}', space=vmem, size = 0x400, scoped, tag = 'output window, operand 0, single buffered']
    #allocation3 [shape = 's32[1]{0}', space=sflag, size = 0x4, scoped, tag = 'scoped memory for tpu_custom_call.1']
    %10 = vsyncpa [#allocation3], 0
    // Predicated region
    $region2: #{tpu_custom_call.1} parent=1 // pred_check
      _
    $region3: #{tpu_custom_call.1} parent=1 // pred_check_branch
      %12 = sbr.rel (0) target = $region5
    $region4: #{tpu_custom_call.1} parent=1 // pred_region
      _
    $region5: #{tpu_custom_call.1} parent=1 // pred_fallthru
      _
    // Predicated region
    $region6: #{tpu_custom_call.1} parent=1 // pred_check
      _
    $region7: #{tpu_custom_call.1} parent=1 // pred_check_branch
      %14 = sbr.rel (0) target = $region9
    $region8: #{tpu_custom_call.1} parent=1 // pred_region
      _
    $region9: #{tpu_custom_call.1} parent=1 // pred_fallthru
      _
    // Predicated region
    $region10: #{tpu_custom_call.1} parent=1 // pred_check
      _
    $region11: #{tpu_custom_call.1} parent=1 // pred_check_branch
      %16 = sbr.rel (0) target = $region13
    $region12: #{tpu_custom_call.1} parent=1 // pred_region
      _
    $region13: #{tpu_custom_call.1} parent=1 // pred_fallthru
      _
    // Predicated region
    $region14: #{tpu_custom_call.1} parent=1 // pred_check
      _
    $region15: #{tpu_custom_call.1} parent=1 // pred_check_branch
      %18 = sbr.rel (0) target = $region17
    $region16: #{tpu_custom_call.1} parent=1 // pred_region
      _
    $region17: #{tpu_custom_call.1} parent=1 // pred_fallthru
      _
    // Predicated region
    $region18: #{tpu_custom_call.1} parent=1 // pred_check
      _
    $region19: #{tpu_custom_call.1} parent=1 // pred_check_branch
      %20 = sbr.rel (0) target = $region21
    $region20: #{tpu_custom_call.1} parent=1 // pred_region
      _
    $region21: #{tpu_custom_call.1} parent=1 // pred_fallthru
      _
    %v21 = vld [vmem:[%s0] sm:$0x3]
    %v22 = vld [vmem:[%s1] sm:$0xff]
    %v23 = vld [vmem:[%s1 + $0x8] sm:$0xff]
    %v24 = vld [vmem:[%s2] sm:$0x1]
    %v26 = vlaneseq
    %v27 = vshrl.u32 %v26, 7
    %v28 = vsub.s32 0, %v27
    %v29 = vrot.slane %v24, %v28
    %vm31 = vcmask 130048
    %v33 = vsel %vm31, %v21, 0
    %35 = vmatprep.subr.mxu0 0.0
    %36 = vmatpush1.msra.mxu0 %v22
    %37 = vmatprep.subr.mxu0 0.0
    %38 = vmatpush1.msra.mxu0 %v23
    %39 = vmatprep.subr.mxu0 0.0
    %40 = vmatpush1.msra.mxu0 0.0
    %41 = vmatprep.subr.mxu0 0.0
    %42 = vmatpush1.msra.mxu0 0.0
    %43 = vmatprep.subr.mxu0 0.0
    %44 = vmatpush1.msra.mxu0 0.0
    %45 = vmatprep.subr.mxu0 0.0
    %46 = vmatpush1.msra.mxu0 0.0
    %47 = vmatprep.subr.mxu0 0.0
    %48 = vmatpush1.msra.mxu0 0.0
    %49 = vmatprep.subr.mxu0 0.0
    %50 = vmatpush1.msra.mxu0 0.0
    %51 = vmatprep.subr.mxu0 0.0
    %52 = vmatpush1.msra.mxu0 0.0
    %53 = vmatprep.subr.mxu0 0.0
    %54 = vmatpush1.msra.mxu0 0.0
    %55 = vmatprep.subr.mxu0 0.0
    %56 = vmatpush1.msra.mxu0 0.0
    %57 = vmatprep.subr.mxu0 0.0
    %58 = vmatpush1.msra.mxu0 0.0
    %59 = vmatprep.subr.mxu0 0.0
    %60 = vmatpush1.msra.mxu0 0.0
    %61 = vmatprep.subr.mxu0 0.0
    %62 = vmatpush1.msra.mxu0 0.0
    %63 = vmatprep.subr.mxu0 0.0
    %64 = vmatpush1.msra.mxu0 0.0
    %65 = vmatprep.subr.mxu0 0.0
    %66 = vmatpush1.msra.mxu0 0.0
    %67 = vmatprep.subr.mxu0 0.0
    %68 = vmatpush1.msra.mxu0 0.0
    %69 = vmatprep.subr.mxu0 0.0
    %70 = vmatpush1.msra.mxu0 0.0
    %71 = vmatprep.subr.mxu0 0.0
    %72 = vmatpush1.msra.mxu0 0.0
    %73 = vmatprep.subr.mxu0 0.0
    %74 = vmatpush1.msra.mxu0 0.0
    %75 = vmatprep.subr.mxu0 0.0
    %76 = vmatpush1.msra.mxu0 0.0
    %77 = vmatprep.subr.mxu0 0.0
    %78 = vmatpush1.msra.mxu0 0.0
    %79 = vmatprep.subr.mxu0 0.0
    %80 = vmatpush1.msra.mxu0 0.0
    %81 = vmatprep.subr.mxu0 0.0
    %82 = vmatpush1.msra.mxu0 0.0
    %83 = vmatprep.subr.mxu0 0.0
    %84 = vmatpush1.msra.mxu0 0.0
    %85 = vmatprep.subr.mxu0 0.0
    %86 = vmatpush1.msra.mxu0 0.0
    %87 = vmatprep.subr.mxu0 0.0
    %88 = vmatpush1.msra.mxu0 0.0
    %89 = vmatprep.subr.mxu0 0.0
    %90 = vmatpush1.msra.mxu0 0.0
    %91 = vmatprep.subr.mxu0 0.0
    %92 = vmatpush1.msra.mxu0 0.0
    %93 = vmatprep.subr.mxu0 0.0
    %94 = vmatpush1.msra.mxu0 0.0
    %95 = vmatprep.subr.mxu0 0.0
    %96 = vmatpush1.msra.mxu0 0.0
    %97 = vmatprep.subr.mxu0 0.0
    %98 = vmatpush1.msra.mxu0 0.0
    %99 = vmatprep.mubr.f32.mxu0 0.0
    %100 = vmatmul.mubr.f32.gmra.mrb[0].mxu0 %v33
    %v101 = vpop.f32.mrb[0].mxu0
    %v102 = vadd.f32 %v29, %v101
    %v103 = vpop.f32.mrb[0].mxu0
    %104 = vdwg.mxu0
    %v105 = vmax.f32 %v102, 0.0
    %v106 = vld [vmem:[%s3] sm:$0xff]
    %v107 = vld [vmem:[%s3 + $0x8] sm:$0xff]
    %v108 = vld [vmem:[%s3 + $0x10] sm:$0xff]
    %v109 = vld [vmem:[%s3 + $0x18] sm:$0xff]
    %v110 = vld [vmem:[%s4] sm:$0x1]
    %v112 = vlaneseq
    %v113 = vshrl.u32 %v112, 7
    %v114 = vsub.s32 0, %v113
    %v115 = vrot.slane %v110, %v114
    %vm117 = vcmask 261120
    %v119 = vsel %vm117, %v105, 0
    %121 = vmatprep.subr.mxu0 0.0
    %122 = vmatpush1.msra.mxu0 %v106
    %123 = vmatprep.subr.mxu0 0.0
    %124 = vmatpush1.msra.mxu0 %v107
    %125 = vmatprep.subr.mxu0 0.0
    %126 = vmatpush1.msra.mxu0 %v108
    %127 = vmatprep.subr.mxu0 0.0
    %128 = vmatpush1.msra.mxu0 %v109
    %129 = vmatprep.subr.mxu0 0.0
    %130 = vmatpush1.msra.mxu0 0.0
    %131 = vmatprep.subr.mxu0 0.0
    %132 = vmatpush1.msra.mxu0 0.0
    %133 = vmatprep.subr.mxu0 0.0
    %134 = vmatpush1.msra.mxu0 0.0
    %135 = vmatprep.subr.mxu0 0.0
    %136 = vmatpush1.msra.mxu0 0.0
    %137 = vmatprep.subr.mxu0 0.0
    %138 = vmatpush1.msra.mxu0 0.0
    %139 = vmatprep.subr.mxu0 0.0
    %140 = vmatpush1.msra.mxu0 0.0
    %141 = vmatprep.subr.mxu0 0.0
    %142 = vmatpush1.msra.mxu0 0.0
    %143 = vmatprep.subr.mxu0 0.0
    %144 = vmatpush1.msra.mxu0 0.0
    %145 = vmatprep.subr.mxu0 0.0
    %146 = vmatpush1.msra.mxu0 0.0
    %147 = vmatprep.subr.mxu0 0.0
    %148 = vmatpush1.msra.mxu0 0.0
    %149 = vmatprep.subr.mxu0 0.0
    %150 = vmatpush1.msra.mxu0 0.0
    %151 = vmatprep.subr.mxu0 0.0
    %152 = vmatpush1.msra.mxu0 0.0
    %153 = vmatprep.subr.mxu0 0.0
    %154 = vmatpush1.msra.mxu0 0.0
    %155 = vmatprep.subr.mxu0 0.0
    %156 = vmatpush1.msra.mxu0 0.0
    %157 = vmatprep.subr.mxu0 0.0
    %158 = vmatpush1.msra.mxu0 0.0
    %159 = vmatprep.subr.mxu0 0.0
    %160 = vmatpush1.msra.mxu0 0.0
    %161 = vmatprep.subr.mxu0 0.0
    %162 = vmatpush1.msra.mxu0 0.0
    %163 = vmatprep.subr.mxu0 0.0
    %164 = vmatpush1.msra.mxu0 0.0
    %165 = vmatprep.subr.mxu0 0.0
    %166 = vmatpush1.msra.mxu0 0.0
    %167 = vmatprep.subr.mxu0 0.0
    %168 = vmatpush1.msra.mxu0 0.0
    %169 = vmatprep.subr.mxu0 0.0
    %170 = vmatpush1.msra.mxu0 0.0
    %171 = vmatprep.subr.mxu0 0.0
    %172 = vmatpush1.msra.mxu0 0.0
    %173 = vmatprep.subr.mxu0 0.0
    %174 = vmatpush1.msra.mxu0 0.0
    %175 = vmatprep.subr.mxu0 0.0
    %176 = vmatpush1.msra.mxu0 0.0
    %177 = vmatprep.subr.mxu0 0.0
    %178 = vmatpush1.msra.mxu0 0.0
    %179 = vmatprep.subr.mxu0 0.0
    %180 = vmatpush1.msra.mxu0 0.0
    %181 = vmatprep.subr.mxu0 0.0
    %182 = vmatpush1.msra.mxu0 0.0
    %183 = vmatprep.subr.mxu0 0.0
    %184 = vmatpush1.msra.mxu0 0.0
    %185 = vmatprep.mubr.f32.mxu0 0.0
    %186 = vmatmul.mubr.f32.gmra.mrb[0].mxu0 %v119
    %v187 = vpop.f32.mrb[0].mxu0
    %v188 = vadd.f32 %v115, %v187
    %v189 = vpop.f32.mrb[0].mxu0
    %190 = vdwg.mxu0
    %v191 = vxor.u32 %v188, 2147483648
    %v192 = vmul.f32 %v191, 1.442695
    %v193 = vpow.pop %v192
    %v194 = vadd.f32 %v193, 1.0
    %v195 = vrcp.pop %v194
    %v196 = vmul.f32 1.0, %v195
    %vm197 = vcmask 58368
    %198 = vst.msk [vmem:[#allocation2] sm:$0x3] %vm197, %v196
    // Predicated region
    $region22: #{tpu_custom_call.1} parent=1 // pred_check
      _
    $region23: #{tpu_custom_call.1} parent=1 // pred_check_branch
      %200 = sbr.rel (0) target = $region25
    $region24: #{tpu_custom_call.1} parent=1 // pred_region
      %s202 = ssub.s32 32, 32
      %203 = vsyncadd [#allocation3], %s202
      %s205 = sshll.u32 [#allocation2], 4
      %s206 = int_to_ptr.vmem [resolvable:$true] %s205
      %208 = dma.vmem_to_hbm [thread:$0]  %s206, 32, %s5, [#allocation3]
    $region25: #{tpu_custom_call.1} parent=1 // pred_fallthru
      _
    // Predicated region
    $region26: #{tpu_custom_call.1} parent=1 // pred_check
      _
    $region27: #{tpu_custom_call.1} parent=1 // pred_check_branch
      %210 = sbr.rel (0) target = $region29
    $region28: #{tpu_custom_call.1} parent=1 // pred_region
      %211 = dma.done [#allocation3], 32
    $region29: #{tpu_custom_call.1} parent=1 // pred_fallthru
      _
    %212 = vsyncpa [#allocation3], 1

</llo_original>
